<compile_context>
chip_gen: v7x
topology: tpu7x:2x2x1
jax: 0.10.0
libtpu: 0.0.40
codegen_flags: <defaults>
</compile_context>

<pallas_src>
import jax
import jax.numpy as jnp
import numpy as np
from jax.experimental import pallas as pl
from jax.experimental.pallas import tpu as pltpu


# ----------------------------- Pallas kernel -------------------------------
def _make_kernel(use_mxu_grid):
    """Kernel factory. One grid step == one block of `hb` MLP heads over all
    G_pad grid points.

    lhs_ref  : (G_pad, 8)     f32   columns [gx, gy, 1, 0, 0, 0, 0, 0]
    rhs0_ref : (hb, 8, 512)   f32|bf16  rows [Wb_gx, Wb_gy, bias0, 0...] per head
                                       (bias0 = x0 @ Wa^T + ba + bb, hoisted)
    w1T_ref  : (hb, 512, 256) bf16
    b1_ref   : (hb, 1, 256)   f32
    w2T_ref  : (hb, 256, 128) bf16
    b2_ref   : (hb, 1, 128)   f32
    w3t_ref  : (hb, 8, 128)   bf16  transposed last layer, 3 rows padded to 8
    b3_ref   : (hb, 8, 1)     f32
    out_ref  : (hb, 8, G_pad) f32   transposed narrow output
    """

    def kernel(lhs_ref, rhs0_ref, w1T_ref, b1_ref, w2T_ref, b2_ref,
               w3t_ref, b3_ref, out_ref):
        hb = out_ref.shape[0]

        if use_mxu_grid:
            lhs_b = lhs_ref[...].astype(jnp.bfloat16)       # (G_pad, 8)
        else:
            lhs = lhs_ref[...]                              # (G_pad, 8)
            gx = lhs[:, 0:1]                                # (G_pad, 1)
            gy = lhs[:, 1:2]                                # (G_pad, 1)

        def head(h, carry):
            rhs0 = rhs0_ref[h]                              # (8, 512)
            if use_mxu_grid:
                # grid branch on the MXU (VALU slot is the first to saturate
                # at large G); bias0 is folded in as the "1" column's row.
                y0 = jnp.dot(lhs_b, rhs0,
                             preferred_element_type=jnp.float32)       # (G_pad, 512)
            else:
                # tiny G: two VPU broadcast-FMAs + folded bias row.
                y0 = gx * rhs0[0:1, :] + gy * rhs0[1:2, :] + rhs0[2:3, :]
            a = jnp.maximum(y0, 0.0)

            # decoder: ReLU -> 512->256 -> ReLU -> 256->128 -> ReLU -> 128->3 -> Tanh
            # TODO(synk): on v6e/v7x the bias+ReLU could run in bf16 (2x VALU pack).
            a = jnp.maximum(
                jnp.dot(a.astype(jnp.bfloat16), w1T_ref[h],
                        preferred_element_type=jnp.float32) + b1_ref[h], 0.0)
            a = jnp.maximum(
                jnp.dot(a.astype(jnp.bfloat16), w2T_ref[h],
                        preferred_element_type=jnp.float32) + b2_ref[h], 0.0)

            # transposed last layer: (8, 128) x (G_pad, 128)^T -> (8, G_pad)
            ot = jax.lax.dot_general(
                w3t_ref[h], a.astype(jnp.bfloat16),
                dimension_numbers=(((1,), (1,)), ((), ())),
                preferred_element_type=jnp.float32) + b3_ref[h]
            out_ref[h] = jnp.tanh(ot).astype(out_ref.dtype)
            return carry

        # fori_loop (not a static Python unroll) bounds each head's live ranges.
        jax.lax.fori_loop(0, hb, head, 0)

    return kernel


# ------------------------------- planning -----------------------------------
def _device_kind():
    try:
        return jax.devices()[0].device_kind.lower()
    except Exception:
        return ""


def _plan_blocks(n_mlp, G_pad, s0, s1, s2, deep_buffer, budget_bytes=16 << 20):
    """Heads per Pallas grid step, from a real VMEM accounting:
    pipelined weight/bias/output blocks (x buffer depth) plus the single-head
    live intermediates (the fori_loop bounds them to one head). hb is capped at
    n_mlp//2 so there are always >= 2 grid steps (shards across both
    TensorCores on v7x and gives the pipeline something to overlap)."""
    wbuf = 3 if deep_buffer else 2                            # Buffered(3) only on v5e
    w_bytes = 2 * (s0 * s1 + s1 * s2 + 8 * s2)                # bf16 decoder weights / head
    sm_bytes = 4 * (8 * s0 + s1 + s2 + 8)                     # rhs0 + biases / head (f32 bound)
    out_bytes = 4 * 8 * G_pad                                 # transposed f32 output / head
    per_head = w_bytes * wbuf + (sm_bytes + out_bytes) * 2
    live = G_pad * (4 * (s0 + s1 + s2)                        # f32 activations (one head)
                    + 2 * (s0 + s1 + s2)                      # bf16 casts
                    + 2 * 4 * 8)                              # (8, G) pre/post tanh
    fixed = int(1.5 * live) + 2 * 4 * G_pad * 8               # headroom + double-buffered lhs
    hb_cap = n_mlp if n_mlp < 2 else max(1, n_mlp // 2)
    hb = 1                                                    # hb=1 always legal; no fallback
    for cand in range(1, hb_cap + 1):
        if n_mlp % cand == 0 and cand * per_head + fixed <= budget_bytes:
            hb = cand
    return hb


# ------------------------------- wrapper ------------------------------------
def reconstructeur_forward(x0, grid_pts, params):
    """x0: (latent,), grid_pts: (G, 2). Returns (n_mlp*G, 3) float32."""
    aT, ba, bT, bb, w1T, b1, w2T, b2, w3T, b3 = params
    n_mlp = aT.shape[0]
    G = grid_pts.shape[0]
    out_dim = w3T.shape[-1]
    s0, s1, s2 = w1T.shape[1], w1T.shape[2], w2T.shape[2]

    # latent branch hoisted out of the kernel; both f0 biases folded in.
    bias0 = jnp.einsum('l,mlf->mf', x0, aT) + ba + bb                    # (n_mlp, s0)

    # pack grid-branch weights + folded bias into one (n_mlp, 8, s0) rhs:
    # rows [Wb_gx, Wb_gy, bias0, 0...]; consumed on the VPU (tiny G) or as one
    # small MXU matmul against lhs = [gx, gy, 1, 0...] (large G).
    rhs0 = jnp.zeros((n_mlp, 8, s0), jnp.float32)
    rhs0 = rhs0.at[:, 0, :].set(bT[:, 0, :])
    rhs0 = rhs0.at[:, 1, :].set(bT[:, 1, :])
    rhs0 = rhs0.at[:, 2, :].set(bias0)

    # pad G: multiple of 16 (bf16 sublane packing); multiple of 128 once large
    # so the transposed (8, G_pad) output stores are lane-dense.
    G_pad = -(-G // 16) * 16
    if G_pad >= 128:
        G_pad = -(-G // 128) * 128
    lhs = jnp.zeros((G_pad, 8), jnp.float32)
    lhs = lhs.at[:G, :2].set(grid_pts)
    lhs = lhs.at[:, 2].set(1.0)                          # selects the folded-bias row

    use_mxu_grid = G >= 256
    rhs0_in = rhs0.astype(jnp.bfloat16) if use_mxu_grid else rhs0

    # transposed, row-padded (3 -> 8) last layer: narrow (8, G) output instead of
    # padding every grid point to 128 lanes.
    w3t = jnp.zeros((n_mlp, 8, s2), jnp.float32).at[:, :out_dim, :].set(
        jnp.transpose(w3T, (0, 2, 1)))
    b3p = jnp.zeros((n_mlp, 8, 1), jnp.float32).at[:, :out_dim, 0].set(b3)

    # bf16 decoder weights (f32 MXU accumulation) — weight DMA is the dominant cost.
    # TODO(synk): int8 (v5e) / fp8 (v7x) weight-only quant would halve it again.
    w1T_b = w1T.astype(jnp.bfloat16)
    w2T_b = w2T.astype(jnp.bfloat16)
    w3t_b = w3t.astype(jnp.bfloat16)

    b1r = b1.reshape(n_mlp, 1, s1)
    b2r = b2.reshape(n_mlp, 1, s2)

    deep_buffer = "v5" in _device_kind()      # only the lowest-HBM-BW gen benefits
    hb = _plan_blocks(n_mlp, G_pad, s0, s1, s2, deep_buffer)
    nblk = n_mlp // hb

    def head_spec(arr, deep=False):
        shape = (hb,) + arr.shape[1:]
        nd = len(shape)
        idx = lambda i, _nd=nd: (i,) + (0,) * (_nd - 1)
        if deep and deep_buffer and nblk >= 3:
            return pl.BlockSpec(shape, idx, pipeline_mode=pl.Buffered(3))
        return pl.BlockSpec(shape, idx)

    in_specs = [
        pl.BlockSpec((G_pad, 8), lambda i: (0, 0)),      # shared jittered-grid lhs
        head_spec(rhs0_in),                               # grid-branch weights + folded bias
        head_spec(w1T_b, deep=True),
        head_spec(b1r),
        head_spec(w2T_b, deep=True),
        head_spec(b2r),
        head_spec(w3t_b),
        head_spec(b3p),
    ]
    out_spec = pl.BlockSpec((hb, 8, G_pad), lambda i: (i, 0, 0))

    out = pl.pallas_call(
        _make_kernel(use_mxu_grid),
        out_shape=jax.ShapeDtypeStruct((n_mlp, 8, G_pad), jnp.float32),
        grid=(nblk,),
        in_specs=in_specs,
        out_specs=out_spec,
        compiler_params=pltpu.CompilerParams(
            dimension_semantics=("parallel",),           # head blocks shard across TCs (v7x)
            vmem_limit_bytes=32 << 20),                  # block planning keeps us <= 16 MiB
    )(lhs, rhs0_in, w1T_b, b1r, w2T_b, b2r, w3t_b, b3p)

    out = out[:, :out_dim, :G]                           # (n_mlp, 3, G)
    return jnp.transpose(out, (0, 2, 1)).reshape(n_mlp * G, out_dim)


# --------------------------- pure-JAX reference ------------------------------
def reconstructeur_reference(x0, grid_pts, params):
    aT, ba, bT, bb, w1T, b1, w2T, b2, w3T, b3 = params
    y0_a = jnp.einsum('l,mlf->mf', x0, aT)[:, None, :] + ba[:, None, :]   # (n_mlp, 1, 512)
    y0_b = jnp.einsum('gi,mif->mgf', grid_pts, bT) + bb[:, None, :]       # (n_mlp, G, 512)
    h = jax.nn.relu(y0_a + y0_b)
    h = jax.nn.relu(jnp.einsum('mgf,mfh->mgh', h, w1T) + b1[:, None, :])
    h = jax.nn.relu(jnp.einsum('mgf,mfh->mgh', h, w2T) + b2[:, None, :])
    out = jnp.tanh(jnp.einsum('mgf,mfh->mgh', h, w3T) + b3[:, None, :])
    n_mlp, G, out_dim = out.shape
    return out.reshape(n_mlp * G, out_dim)


# ------------------------------ param setup ----------------------------------
def make_params(key, n_mlp, latent_size, input_dim=2, output_dim=3, sizes=(512, 256, 128)):
    """Deterministic synthetic init (xavier-normal-ish weights, small biases)."""
    def dense(key, in_f, out_f):
        kw, kb = jax.random.split(key)
        std = (2.0 / (in_f + out_f)) ** 0.5
        wT = jax.random.normal(kw, (in_f, out_f), jnp.float32) * std   # pre-transposed (in, out)
        b = jax.random.normal(kb, (out_f,), jnp.float32) * 0.01
        return wT, b

    keys = jax.random.split(key, 5 * n_mlp)
    aT, ba, bT, bb = [], [], [], []
    w1T, b1, w2T, b2, w3T, b3 = [], [], [], [], [], []
    for m in range(n_mlp):
        k0, k1, k2, k3, k4 = keys[5 * m:5 * m + 5]
        w, b = dense(k0, latent_size, sizes[0]); aT.append(w); ba.append(b)
        w, b = dense(k1, input_dim, sizes[0]);   bT.append(w); bb.append(b)
        w, b = dense(k2, sizes[0], sizes[1]);    w1T.append(w); b1.append(b)
        w, b = dense(k3, sizes[1], sizes[2]);    w2T.append(w); b2.append(b)
        w, b = dense(k4, sizes[2], output_dim);  w3T.append(w); b3.append(b)

    stack = lambda xs: jnp.stack(xs, axis=0)
    return (stack(aT), stack(ba), stack(bT), stack(bb),
            stack(w1T), stack(b1), stack(w2T), stack(b2), stack(w3T), stack(b3))


def gen_grid(n_grid_step, input_dim=2):
    """Same construction as Reconstructeur._gen_grid (np.meshgrid 'xy' convention)."""
    points_dim = [np.linspace(-1, 1, n_grid_step) for _ in range(input_dim)]
    x_coo, y_coo = np.meshgrid(*points_dim)
    x_coo, y_coo = x_coo.reshape(-1), y_coo.reshape(-1)
    grid = np.stack([x_coo, y_coo], axis=-1).astype(np.float32)
    return jnp.asarray(grid)


# --------------------------------- main --------------------------------------
if __name__ == "__main__":
    def run_case(n_mlp, latent_size, n_grid_step, key, tol):
        grid_rand = 1.0 / (n_grid_step - 1)
        k_params, k_x, k_noise = jax.random.split(key, 3)
        params = make_params(k_params, n_mlp, latent_size)
        x0 = jax.random.normal(k_x, (latent_size,), jnp.float32)
        base_grid = gen_grid(n_grid_step)
        # jitter the grid like `grid + torch.rand(...) * grid_rand` (deterministic key)
        grid_pts = base_grid + jax.random.uniform(k_noise, base_grid.shape) * grid_rand

        out = jax.block_until_ready(reconstructeur_forward(x0, grid_pts, params))
        ref = reconstructeur_reference(x0, grid_pts, params)
        assert out.shape == (n_mlp * n_grid_step * n_grid_step, 3), out.shape
        # bf16 weights / bf16 MXU casts vs the f32 reference -> loosened tolerance
        np.testing.assert_allclose(np.asarray(out), np.asarray(ref), rtol=tol, atol=tol)

    key = jax.random.PRNGKey(0)
    k1, k2 = jax.random.split(key)

    # small config (module-scale): VPU grid-branch path, hb=1, 2 grid steps
    run_case(n_mlp=2, latent_size=32, n_grid_step=4, key=k1, tol=2e-2)
    # larger config: MXU grid-branch path, multi-head blocks, lane-dense output
    run_case(n_mlp=8, latent_size=32, n_grid_step=18, key=k2, tol=2.5e-2)

    print("KERNEL_OK")
</pallas_src>

<mosaic_0001>
module attributes {stable_mosaic.version = 11 : i64} {
  func.func @kernel(%arg0: i32, %arg1: memref<16x8xf32, #tpu.memory_space<vmem>>, %arg2: memref<1x8x512xf32, #tpu.memory_space<vmem>>, %arg3: memref<1x512x256xbf16, #tpu.memory_space<vmem>>, %arg4: memref<1x1x256xf32, #tpu.memory_space<vmem>>, %arg5: memref<1x256x128xbf16, #tpu.memory_space<vmem>>, %arg6: memref<1x1x128xf32, #tpu.memory_space<vmem>>, %arg7: memref<1x8x128xbf16, #tpu.memory_space<vmem>>, %arg8: memref<1x8x1xf32, #tpu.memory_space<vmem>>, %arg9: memref<1x8x16xf32, #tpu.memory_space<vmem>>) attributes {dimension_semantics = [#tpu.dimension_semantics<parallel>], iteration_bounds = array<i64: 2>, scalar_prefetch = 0 : i64, scratch_operands = 0 : i64, tpu.core_type = #tpu.core_type<tc>, window_params = [{pipeline_mode = #tpu.pipeline_mode<synchronous>, transform_indices = @transform_0, window_bounds = array<i64: 16, 8>}, {transform_indices = @transform_1, window_bounds = array<i64: 1, 8, 512>}, {transform_indices = @transform_2, window_bounds = array<i64: 1, 512, 256>}, {transform_indices = @transform_3, window_bounds = array<i64: 1, 1, 256>}, {transform_indices = @transform_4, window_bounds = array<i64: 1, 256, 128>}, {transform_indices = @transform_5, window_bounds = array<i64: 1, 1, 128>}, {transform_indices = @transform_6, window_bounds = array<i64: 1, 8, 128>}, {transform_indices = @transform_7, window_bounds = array<i64: 1, 8, 1>}, {transform_indices = @transform_8, window_bounds = array<i64: 1, 8, 16>}]} {
    %c0 = arith.constant 0 : index
    %c0_0 = arith.constant 0 : index
    %0 = vector.load %arg1[%c0, %c0_0] : memref<16x8xf32, #tpu.memory_space<vmem>>, vector<16x8xf32>
    %1 = vector.extract_strided_slice %0 {offsets = [0, 0], sizes = [16, 1], strides = [1, 1]} : vector<16x8xf32> to vector<16x1xf32>
    %2 = vector.extract_strided_slice %0 {offsets = [0, 1], sizes = [16, 1], strides = [1, 1]} : vector<16x8xf32> to vector<16x1xf32>
    %c0_i32 = arith.constant 0 : i32
    %3 = arith.index_cast %c0_i32 : i32 to index
    %c0_1 = arith.constant 0 : index
    %c0_2 = arith.constant 0 : index
    %4 = vector.load %arg2[%3, %c0_1, %c0_2] : memref<1x8x512xf32, #tpu.memory_space<vmem>>, vector<1x8x512xf32>
    %5 = vector.shape_cast %4 : vector<1x8x512xf32> to vector<8x512xf32>
    %6 = vector.extract_strided_slice %5 {offsets = [0, 0], sizes = [1, 512], strides = [1, 1]} : vector<8x512xf32> to vector<1x512xf32>
    %7 = vector.broadcast %1 : vector<16x1xf32> to vector<16x512xf32>
    %8 = vector.broadcast %6 : vector<1x512xf32> to vector<16x512xf32>
    %9 = arith.mulf %7, %8 : vector<16x512xf32>
    %10 = vector.extract_strided_slice %5 {offsets = [1, 0], sizes = [1, 512], strides = [1, 1]} : vector<8x512xf32> to vector<1x512xf32>
    %11 = vector.broadcast %2 : vector<16x1xf32> to vector<16x512xf32>
    %12 = vector.broadcast %10 : vector<1x512xf32> to vector<16x512xf32>
    %13 = arith.mulf %11, %12 : vector<16x512xf32>
    %14 = arith.addf %9, %13 : vector<16x512xf32>
    %15 = vector.extract_strided_slice %5 {offsets = [2, 0], sizes = [1, 512], strides = [1, 1]} : vector<8x512xf32> to vector<1x512xf32>
    %16 = vector.broadcast %15 : vector<1x512xf32> to vector<16x512xf32>
    %17 = arith.addf %14, %16 : vector<16x512xf32>
    %cst = arith.constant 0.000000e+00 : f32
    %18 = vector.broadcast %cst : f32 to vector<16x512xf32>
    %19 = arith.maximumf %17, %18 : vector<16x512xf32>
    %20 = arith.truncf %19 : vector<16x512xf32> to vector<16x512xbf16>
    %21 = arith.index_cast %c0_i32 : i32 to index
    %c0_3 = arith.constant 0 : index
    %c0_4 = arith.constant 0 : index
    %22 = vector.load %arg3[%21, %c0_3, %c0_4] : memref<1x512x256xbf16, #tpu.memory_space<vmem>>, vector<1x512x256xbf16>
    %23 = vector.shape_cast %22 : vector<1x512x256xbf16> to vector<512x256xbf16>
    %cst_5 = arith.constant dense<0.000000e+00> : vector<16x256xf32>
    %24 = tpu.matmul %20, %23, %cst_5 {dimension_numbers = #tpu.dot_dimension_numbers<[1], [0], [0], [1], [0, 0, 1, 1], [], []>} : vector<16x512xbf16>, vector<512x256xbf16>, vector<16x256xf32> -> vector<16x256xf32>
    %25 = arith.index_cast %c0_i32 : i32 to index
    %c0_6 = arith.constant 0 : index
    %c0_7 = arith.constant 0 : index
    %26 = vector.load %arg4[%25, %c0_6, %c0_7] : memref<1x1x256xf32, #tpu.memory_space<vmem>>, vector<1x1x256xf32>
    %27 = vector.shape_cast %26 : vector<1x1x256xf32> to vector<1x256xf32>
    %28 = vector.broadcast %27 : vector<1x256xf32> to vector<16x256xf32>
    %29 = arith.addf %24, %28 : vector<16x256xf32>
    %cst_8 = arith.constant 0.000000e+00 : f32
    %30 = vector.broadcast %cst_8 : f32 to vector<16x256xf32>
    %31 = arith.maximumf %29, %30 : vector<16x256xf32>
    %32 = arith.truncf %31 : vector<16x256xf32> to vector<16x256xbf16>
    %33 = arith.index_cast %c0_i32 : i32 to index
    %c0_9 = arith.constant 0 : index
    %c0_10 = arith.constant 0 : index
    %34 = vector.load %arg5[%33, %c0_9, %c0_10] : memref<1x256x128xbf16, #tpu.memory_space<vmem>>, vector<1x256x128xbf16>
    %35 = vector.shape_cast %34 : vector<1x256x128xbf16> to vector<256x128xbf16>
    %cst_11 = arith.constant dense<0.000000e+00> : vector<16x128xf32>
    %36 = tpu.matmul %32, %35, %cst_11 {dimension_numbers = #tpu.dot_dimension_numbers<[1], [0], [0], [1], [0, 0, 1, 1], [], []>} : vector<16x256xbf16>, vector<256x128xbf16>, vector<16x128xf32> -> vector<16x128xf32>
    %37 = arith.index_cast %c0_i32 : i32 to index
    %c0_12 = arith.constant 0 : index
    %c0_13 = arith.constant 0 : index
    %38 = vector.load %arg6[%37, %c0_12, %c0_13] : memref<1x1x128xf32, #tpu.memory_space<vmem>>, vector<1x1x128xf32>
    %39 = vector.shape_cast %38 : vector<1x1x128xf32> to vector<1x128xf32>
    %40 = vector.broadcast %39 : vector<1x128xf32> to vector<16x128xf32>
    %41 = arith.addf %36, %40 : vector<16x128xf32>
    %cst_14 = arith.constant 0.000000e+00 : f32
    %42 = vector.broadcast %cst_14 : f32 to vector<16x128xf32>
    %43 = arith.maximumf %41, %42 : vector<16x128xf32>
    %44 = arith.index_cast %c0_i32 : i32 to index
    %c0_15 = arith.constant 0 : index
    %c0_16 = arith.constant 0 : index
    %45 = vector.load %arg7[%44, %c0_15, %c0_16] : memref<1x8x128xbf16, #tpu.memory_space<vmem>>, vector<1x8x128xbf16>
    %46 = vector.shape_cast %45 : vector<1x8x128xbf16> to vector<8x128xbf16>
    %47 = arith.truncf %43 : vector<16x128xf32> to vector<16x128xbf16>
    %cst_17 = arith.constant dense<0.000000e+00> : vector<8x16xf32>
    %48 = tpu.matmul %46, %47, %cst_17 {dimension_numbers = #tpu.dot_dimension_numbers<[1], [1], [0], [0], [0, 0, 1, 0], [], []>} : vector<8x128xbf16>, vector<16x128xbf16>, vector<8x16xf32> -> vector<8x16xf32>
    %49 = arith.index_cast %c0_i32 : i32 to index
    %c0_18 = arith.constant 0 : index
    %c0_19 = arith.constant 0 : index
    %50 = vector.load %arg8[%49, %c0_18, %c0_19] : memref<1x8x1xf32, #tpu.memory_space<vmem>>, vector<1x8x1xf32>
    %51 = vector.shape_cast %50 : vector<1x8x1xf32> to vector<8x1xf32>
    %52 = vector.broadcast %51 : vector<8x1xf32> to vector<8x16xf32>
    %53 = arith.addf %48, %52 : vector<8x16xf32>
    %54 = math.tanh %53 : vector<8x16xf32>
    %55 = arith.index_cast %c0_i32 : i32 to index
    %c0_20 = arith.constant 0 : index
    %c0_21 = arith.constant 0 : index
    %56 = vector.load %arg9[%55, %c0_20, %c0_21] : memref<1x8x16xf32, #tpu.memory_space<vmem>>, vector<1x8x16xf32>
    %57 = vector.shape_cast %56 : vector<1x8x16xf32> to vector<8x16xf32>
    %58 = vector.shape_cast %54 : vector<8x16xf32> to vector<1x8x16xf32>
    tpu.vector_store %arg9[%55, %c0_20, %c0_21], %58 {strides = array<i32>} : memref<1x8x16xf32, #tpu.memory_space<vmem>>, vector<1x8x16xf32>,
    %c1_i32 = arith.constant 1 : i32
    return
  }
  func.func @transform_0(%arg0: i32) -> (i32, i32) {
    %c0_i32 = arith.constant 0 : i32
    %c0_i32_0 = arith.constant 0 : i32
    %c0_i32_1 = arith.constant 0 : i32
    return %c0_i32, %c0_i32_0 : i32, i32
  }
  func.func @transform_1(%arg0: i32) -> (i32, i32, i32) {
    %c0_i32 = arith.constant 0 : i32
    %c0_i32_0 = arith.constant 0 : i32
    %c0_i32_1 = arith.constant 0 : i32
    return %arg0, %c0_i32, %c0_i32_0 : i32, i32, i32
  }
  func.func @transform_2(%arg0: i32) -> (i32, i32, i32) {
    %c0_i32 = arith.constant 0 : i32
    %c0_i32_0 = arith.constant 0 : i32
    %c0_i32_1 = arith.constant 0 : i32
    return %arg0, %c0_i32, %c0_i32_0 : i32, i32, i32
  }
  func.func @transform_3(%arg0: i32) -> (i32, i32, i32) {
    %c0_i32 = arith.constant 0 : i32
    %c0_i32_0 = arith.constant 0 : i32
    %c0_i32_1 = arith.constant 0 : i32
    return %arg0, %c0_i32, %c0_i32_0 : i32, i32, i32
  }
  func.func @transform_4(%arg0: i32) -> (i32, i32, i32) {
    %c0_i32 = arith.constant 0 : i32
    %c0_i32_0 = arith.constant 0 : i32
    %c0_i32_1 = arith.constant 0 : i32
    return %arg0, %c0_i32, %c0_i32_0 : i32, i32, i32
  }
  func.func @transform_5(%arg0: i32) -> (i32, i32, i32) {
    %c0_i32 = arith.constant 0 : i32
    %c0_i32_0 = arith.constant 0 : i32
    %c0_i32_1 = arith.constant 0 : i32
    return %arg0, %c0_i32, %c0_i32_0 : i32, i32, i32
  }
  func.func @transform_6(%arg0: i32) -> (i32, i32, i32) {
    %c0_i32 = arith.constant 0 : i32
    %c0_i32_0 = arith.constant 0 : i32
    %c0_i32_1 = arith.constant 0 : i32
    return %arg0, %c0_i32, %c0_i32_0 : i32, i32, i32
  }
  func.func @transform_7(%arg0: i32) -> (i32, i32, i32) {
    %c0_i32 = arith.constant 0 : i32
    %c0_i32_0 = arith.constant 0 : i32
    %c0_i32_1 = arith.constant 0 : i32
    return %arg0, %c0_i32, %c0_i32_0 : i32, i32, i32
  }
  func.func @transform_8(%arg0: i32) -> (i32, i32, i32) {
    %c0_i32 = arith.constant 0 : i32
    %c0_i32_0 = arith.constant 0 : i32
    %c0_i32_1 = arith.constant 0 : i32
    return %arg0, %c0_i32, %c0_i32_0 : i32, i32, i32
  }
}

</mosaic_0001>

<llo_original>
// kernel: tpu_custom_call.1
$region0: #{tpu_custom_call.1}
  #allocation0 [shape = 'u32[]', space=smem, size = 0x4, offset = 0x4, fixed_abs, tag = 'smem constant byte address 0x4 - core index']
  #allocation1 [shape = 'u32[144,128]{1,0:T(1,128)}', space=vmem, size = 0x12000, scoped, tag = 'internal scratch']
  %s0 = inlined_call_operand.vmem [shape: f32[16,8], index: 0, kind: input, shape index: {}]
  %s1 = inlined_call_operand.hbm [shape: f32[2,8,512], index: 1, kind: input, shape index: {}]
  %s2 = inlined_call_operand.hbm [shape: bf16[2,512,256], index: 2, kind: input, shape index: {}]
  %s3 = inlined_call_operand.vmem [shape: f32[2,1,256], index: 3, kind: input, shape index: {}]
  %s4 = inlined_call_operand.hbm [shape: bf16[2,256,128], index: 4, kind: input, shape index: {}]
  %s5 = inlined_call_operand.vmem [shape: f32[2,1,128], index: 5, kind: input, shape index: {}]
  %s6 = inlined_call_operand.vmem [shape: bf16[2,8,128], index: 6, kind: input, shape index: {}]
  %s7 = inlined_call_operand.vmem [shape: f32[2,8,1], index: 7, kind: input, shape index: {}]
  %s8 = inlined_call_operand.hbm [shape: f32[2,8,16], index: 8, kind: output, shape index: {}]
  %s9 = sld [smem:[#allocation0]]
  $region77: #{tpu_custom_call.1} parent=0
    _
  %s11 = ssub.s32 1, %s9
  %s12 = scalar_select 0, %s11, %s9
  $region1: #{tpu_custom_call.1} parent=0
    #allocation2 [shape = 'u8[32768]{0}', space=vmem, size = 0x8000, scoped, tag = 'input window, operand 1']
    #allocation3 [shape = 's32[2]{0}', space=sflag, size = 0x8, scoped, tag = 'scoped memory for tpu_custom_call.1']
    #allocation4 [shape = 's32[2]{0}', space=sflag, size = 0x8, scoped, tag = 'scoped memory for tpu_custom_call.1']
    #allocation5 [shape = 'u8[524288]{0}', space=vmem, size = 0x80000, scoped, tag = 'input window, operand 2']
    #allocation6 [shape = 's32[2]{0}', space=sflag, size = 0x8, scoped, tag = 'scoped memory for tpu_custom_call.1']
    #allocation7 [shape = 'u8[131072]{0}', space=vmem, size = 0x20000, scoped, tag = 'input window, operand 4']
    #allocation8 [shape = 'u8[8192]{0}', space=vmem, size = 0x2000, scoped, tag = 'output window, operand 0']
    %13 = vsyncpa [#allocation3], 0
    %s14 = scalar_lea.sflag [#allocation3], 1
    %15 = vsyncpa %s14, 0
    %16 = vsyncpa [#allocation6], 0
    %s17 = scalar_lea.sflag [#allocation6], 1
    %18 = vsyncpa %s17, 0
    %19 = vsyncpa [#allocation4], 0
    %s20 = scalar_lea.sflag [#allocation4], 1
    %21 = vsyncpa %s20, 0
    loop: start=0, step=1, limit=4
    $region2: #{tpu_custom_call.1} parent=1 // loop_pre_header
      _
    $region3: #{tpu_custom_call.1} parent=1 // loop_header
      %s23 = sphi 0, %s27
      %p24 = scmp.ge.s32.totalorder %s23, 4
      %s31 = sphi 0, %s31
      %s33 = sphi 0, %s31
      %s34 = sphi 0, %s33
      %s48 = sphi 0, %s34
      %s54 = sphi 0, %s56
      %s57 = sphi 0, %s54
      %s58 = sphi 0, %s57
      %s74 = sphi 0, %s58
      %s80 = sphi 0, %s82
      %s83 = sphi 0, %s80
      %s84 = sphi 0, %s83
      %s100 = sphi 0, %s84
      %s106 = sphi 0, %s108
      %s109 = sphi 0, %s106
      %s110 = sphi 0, %s109
      %s126 = sphi 0, %s110
      %s132 = sphi 0, %s134
      %s135 = sphi 0, %s132
      %s136 = sphi 0, %s135
      %s152 = sphi 0, %s136
      %s158 = sphi 0, %s160
      %s161 = sphi 0, %s158
      %s162 = sphi 0, %s161
      %s178 = sphi 0, %s162
      %s184 = sphi 0, %s186
      %s187 = sphi 0, %s184
      %s188 = sphi 0, %s187
      %s204 = sphi 0, %s188
      %s210 = sphi 0, %s212
      %s213 = sphi 0, %s210
      %s214 = sphi 0, %s213
      %s230 = sphi 0, %s214
      %s236 = sphi 0, %s238
      %s239 = sphi 0, %s236
      %s240 = sphi 0, %s239
      %s256 = sphi 0, %s240
    $region4: #{tpu_custom_call.1} parent=1 // loop_header_branch
      %26 = sbr.rel (%p24) target = $region8
    $region5: #{tpu_custom_call.1} parent=1 // loop_body
      %s28 = ssub.s32 %s23, 1
      %s29 = ssub.s32 %s23, 2
      %s30 = sadd.s32 %s23, 1
      %s32 = sadd.s32 %s31, 1
      %p35 = scmp.eq.s32.totalorder %s23, 1
      %p36 = scmp.ne.s32.totalorder %s31, %s33
      %p37 = scmp.eq.s32.totalorder %s23, 0
      %p38 = por %p36, %p37
      %p39 = scmp.ne.s32.totalorder %s31, %s33
      %p40 = scmp.eq.s32.totalorder %s28, 1
      %p41 = por %p39, %p40
      %p42 = scmp.ne.s32.totalorder %s33, %s34
      %p43 = scmp.eq.s32.totalorder %s28, 0
      %p44 = por %p42, %p43
      %p45 = scmp.ne.s32.totalorder %s33, %s34
      %p46 = scmp.eq.s32.totalorder %s29, 1
      %p47 = por %p45, %p46
      %p49 = scmp.ne.s32.totalorder %s34, %s48
      %p50 = scmp.eq.s32.totalorder %s29, 0
      %p51 = por %p49, %p50
      %s52 = ssub.s32 %s23, %s30
      %p53 = scmp.eq.s32.totalorder %s52, 0
      %s55 = sadd.s32 %s54, 1
      %s56 = scalar_select %p53, %s54, %s55
      %p59 = pneg %p53
      %p60 = scmp.eq.s32.totalorder %s23, 1
      %p61 = por %p59, %p60
      %p62 = scmp.ne.s32.totalorder %s54, %s57
      %p63 = scmp.eq.s32.totalorder %s23, 0
      %p64 = por %p62, %p63
      %p65 = scmp.ne.s32.totalorder %s54, %s57
      %p66 = scmp.eq.s32.totalorder %s28, 1
      %p67 = por %p65, %p66
      %p68 = scmp.ne.s32.totalorder %s57, %s58
      %p69 = scmp.eq.s32.totalorder %s28, 0
      %p70 = por %p68, %p69
      %p71 = scmp.ne.s32.totalorder %s57, %s58
      %p72 = scmp.eq.s32.totalorder %s29, 1
      %p73 = por %p71, %p72
      %p75 = scmp.ne.s32.totalorder %s58, %s74
      %p76 = scmp.eq.s32.totalorder %s29, 0
      %p77 = por %p75, %p76
      %s78 = ssub.s32 %s23, %s30
      %p79 = scmp.eq.s32.totalorder %s78, 0
      %s81 = sadd.s32 %s80, 1
      %s82 = scalar_select %p79, %s80, %s81
      %p85 = pneg %p79
      %p86 = scmp.eq.s32.totalorder %s23, 1
      %p87 = por %p85, %p86
      %p88 = scmp.ne.s32.totalorder %s80, %s83
      %p89 = scmp.eq.s32.totalorder %s23, 0
      %p90 = por %p88, %p89
      %p91 = scmp.ne.s32.totalorder %s80, %s83
      %p92 = scmp.eq.s32.totalorder %s28, 1
      %p93 = por %p91, %p92
      %p94 = scmp.ne.s32.totalorder %s83, %s84
      %p95 = scmp.eq.s32.totalorder %s28, 0
      %p96 = por %p94, %p95
      %p97 = scmp.ne.s32.totalorder %s83, %s84
      %p98 = scmp.eq.s32.totalorder %s29, 1
      %p99 = por %p97, %p98
      %p101 = scmp.ne.s32.totalorder %s84, %s100
      %p102 = scmp.eq.s32.totalorder %s29, 0
      %p103 = por %p101, %p102
      %s104 = ssub.s32 %s23, %s30
      %p105 = scmp.eq.s32.totalorder %s104, 0
      %s107 = sadd.s32 %s106, 1
      %s108 = scalar_select %p105, %s106, %s107
      %p111 = pneg %p105
      %p112 = scmp.eq.s32.totalorder %s23, 1
      %p113 = por %p111, %p112
      %p114 = scmp.ne.s32.totalorder %s106, %s109
      %p115 = scmp.eq.s32.totalorder %s23, 0
      %p116 = por %p114, %p115
      %p117 = scmp.ne.s32.totalorder %s106, %s109
      %p118 = scmp.eq.s32.totalorder %s28, 1
      %p119 = por %p117, %p118
      %p120 = scmp.ne.s32.totalorder %s109, %s110
      %p121 = scmp.eq.s32.totalorder %s28, 0
      %p122 = por %p120, %p121
      %p123 = scmp.ne.s32.totalorder %s109, %s110
      %p124 = scmp.eq.s32.totalorder %s29, 1
      %p125 = por %p123, %p124
      %p127 = scmp.ne.s32.totalorder %s110, %s126
      %p128 = scmp.eq.s32.totalorder %s29, 0
      %p129 = por %p127, %p128
      %s130 = ssub.s32 %s23, %s30
      %p131 = scmp.eq.s32.totalorder %s130, 0
      %s133 = sadd.s32 %s132, 1
      %s134 = scalar_select %p131, %s132, %s133
      %p137 = pneg %p131
      %p138 = scmp.eq.s32.totalorder %s23, 1
      %p139 = por %p137, %p138
      %p140 = scmp.ne.s32.totalorder %s132, %s135
      %p141 = scmp.eq.s32.totalorder %s23, 0
      %p142 = por %p140, %p141
      %p143 = scmp.ne.s32.totalorder %s132, %s135
      %p144 = scmp.eq.s32.totalorder %s28, 1
      %p145 = por %p143, %p144
      %p146 = scmp.ne.s32.totalorder %s135, %s136
      %p147 = scmp.eq.s32.totalorder %s28, 0
      %p148 = por %p146, %p147
      %p149 = scmp.ne.s32.totalorder %s135, %s136
      %p150 = scmp.eq.s32.totalorder %s29, 1
      %p151 = por %p149, %p150
      %p153 = scmp.ne.s32.totalorder %s136, %s152
      %p154 = scmp.eq.s32.totalorder %s29, 0
      %p155 = por %p153, %p154
      %s156 = ssub.s32 %s23, %s30
      %p157 = scmp.eq.s32.totalorder %s156, 0
      %s159 = sadd.s32 %s158, 1
      %s160 = scalar_select %p157, %s158, %s159
      %p163 = pneg %p157
      %p164 = scmp.eq.s32.totalorder %s23, 1
      %p165 = por %p163, %p164
      %p166 = scmp.ne.s32.totalorder %s158, %s161
      %p167 = scmp.eq.s32.totalorder %s23, 0
      %p168 = por %p166, %p167
      %p169 = scmp.ne.s32.totalorder %s158, %s161
      %p170 = scmp.eq.s32.totalorder %s28, 1
      %p171 = por %p169, %p170
      %p172 = scmp.ne.s32.totalorder %s161, %s162
      %p173 = scmp.eq.s32.totalorder %s28, 0
      %p174 = por %p172, %p173
      %p175 = scmp.ne.s32.totalorder %s161, %s162
      %p176 = scmp.eq.s32.totalorder %s29, 1
      %p177 = por %p175, %p176
      %p179 = scmp.ne.s32.totalorder %s162, %s178
      %p180 = scmp.eq.s32.totalorder %s29, 0
      %p181 = por %p179, %p180
      %s182 = ssub.s32 %s23, %s30
      %p183 = scmp.eq.s32.totalorder %s182, 0
      %s185 = sadd.s32 %s184, 1
      %s186 = scalar_select %p183, %s184, %s185
      %p189 = pneg %p183
      %p190 = scmp.eq.s32.totalorder %s23, 1
      %p191 = por %p189, %p190
      %p192 = scmp.ne.s32.totalorder %s184, %s187
      %p193 = scmp.eq.s32.totalorder %s23, 0
      %p194 = por %p192, %p193
      %p195 = scmp.ne.s32.totalorder %s184, %s187
      %p196 = scmp.eq.s32.totalorder %s28, 1
      %p197 = por %p195, %p196
      %p198 = scmp.ne.s32.totalorder %s187, %s188
      %p199 = scmp.eq.s32.totalorder %s28, 0
      %p200 = por %p198, %p199
      %p201 = scmp.ne.s32.totalorder %s187, %s188
      %p202 = scmp.eq.s32.totalorder %s29, 1
      %p203 = por %p201, %p202
      %p205 = scmp.ne.s32.totalorder %s188, %s204
      %p206 = scmp.eq.s32.totalorder %s29, 0
      %p207 = por %p205, %p206
      %s208 = ssub.s32 %s23, %s30
      %p209 = scmp.eq.s32.totalorder %s208, 0
      %s211 = sadd.s32 %s210, 1
      %s212 = scalar_select %p209, %s210, %s211
      %p215 = pneg %p209
      %p216 = scmp.eq.s32.totalorder %s23, 1
      %p217 = por %p215, %p216
      %p218 = scmp.ne.s32.totalorder %s210, %s213
      %p219 = scmp.eq.s32.totalorder %s23, 0
      %p220 = por %p218, %p219
      %p221 = scmp.ne.s32.totalorder %s210, %s213
      %p222 = scmp.eq.s32.totalorder %s28, 1
      %p223 = por %p221, %p222
      %p224 = scmp.ne.s32.totalorder %s213, %s214
      %p225 = scmp.eq.s32.totalorder %s28, 0
      %p226 = por %p224, %p225
      %p227 = scmp.ne.s32.totalorder %s213, %s214
      %p228 = scmp.eq.s32.totalorder %s29, 1
      %p229 = por %p227, %p228
      %p231 = scmp.ne.s32.totalorder %s214, %s230
      %p232 = scmp.eq.s32.totalorder %s29, 0
      %p233 = por %p231, %p232
      %s234 = ssub.s32 %s23, %s30
      %p235 = scmp.eq.s32.totalorder %s234, 0
      %s237 = sadd.s32 %s236, 1
      %s238 = scalar_select %p235, %s236, %s237
      %p241 = pneg %p235
      %p242 = scmp.eq.s32.totalorder %s23, 1
      %p243 = por %p241, %p242
      %p244 = scmp.ne.s32.totalorder %s236, %s239
      %p245 = scmp.eq.s32.totalorder %s23, 0
      %p246 = por %p244, %p245
      %p247 = scmp.ne.s32.totalorder %s236, %s239
      %p248 = scmp.eq.s32.totalorder %s28, 1
      %p249 = por %p247, %p248
      %p250 = scmp.ne.s32.totalorder %s239, %s240
      %p251 = scmp.eq.s32.totalorder %s28, 0
      %p252 = por %p250, %p251
      %p253 = scmp.ne.s32.totalorder %s239, %s240
      %p254 = scmp.eq.s32.totalorder %s29, 1
      %p255 = por %p253, %p254
      %p257 = scmp.ne.s32.totalorder %s240, %s256
      %p258 = scmp.eq.s32.totalorder %s29, 0
      %p259 = por %p257, %p258
      %p260 = scmp.le.s32.totalorder 1, %s23
      %p261 = scmp.lt.s32.totalorder %s23, 3
      %p262 = pnand %p260, %p261
      %p263 = pneg %p262
      // Predicated region
      $region9: #{tpu_custom_call.1} parent=5 // pred_check
        _
      $region10: #{tpu_custom_call.1} parent=5 // pred_check_branch
        %265 = sbr.rel (%p262) target = $region12
      $region11: #{tpu_custom_call.1} parent=5 // pred_region
        %s266 = ssub.s32 %s23, 1
        // Predicated region
        $region13: #{tpu_custom_call.1} parent=11 // pred_check
          %p267 = pneg %p44
        $region14: #{tpu_custom_call.1} parent=11 // pred_check_branch
          %269 = sbr.rel (%p267) target = $region16
        $region15: #{tpu_custom_call.1} parent=11 // pred_region
          _
        $region16: #{tpu_custom_call.1} parent=11 // pred_fallthru
          _
      $region12: #{tpu_custom_call.1} parent=5 // pred_fallthru
        _
      %p270 = scmp.lt.s32.totalorder %s23, 2
      // Predicated region
      $region17: #{tpu_custom_call.1} parent=5 // pred_check
        %p271 = pneg %p270
      $region18: #{tpu_custom_call.1} parent=5 // pred_check_branch
        %273 = sbr.rel (%p271) target = $region20
      $region19: #{tpu_custom_call.1} parent=5 // pred_region
        // Predicated region
        $region21: #{tpu_custom_call.1} parent=19 // pred_check
          %p274 = pneg %p64
        $region22: #{tpu_custom_call.1} parent=19 // pred_check_branch
          %276 = sbr.rel (%p274) target = $region24
        $region23: #{tpu_custom_call.1} parent=19 // pred_region
          %s277 = sand.u32 %s54, 1
          %s278 = scalar_lea.sflag [#allocation3], %s277
          %s279 = sand.u32 %s54, 1
          %s280 = smul.addr %s279, 32
          %s281 = scalar_lea.vmem [#allocation2], %s280
          %s283 = ssub.s32 512, 512
          %284 = vsyncadd %s278, %s283
          %s285 = smul.addr %s23, 4
          %s286 = smul.addr %s285, 128
          %s287 = scalar_lea.hbm %s1, %s286
          %s289 = sshll.u32 %s281, 4
          %s290 = int_to_ptr.vmem [resolvable:$true] %s289
          %292 = dma.hbm_to_vmem [thread:$0]  %s287, 512, %s290, %s278
        $region24: #{tpu_custom_call.1} parent=19 // pred_fallthru
          _
        // Predicated region
        $region25: #{tpu_custom_call.1} parent=19 // pred_check
          %p293 = pneg %p90
        $region26: #{tpu_custom_call.1} parent=19 // pred_check_branch
          %295 = sbr.rel (%p293) target = $region28
        $region27: #{tpu_custom_call.1} parent=19 // pred_region
          %s296 = sand.u32 %s23, 1
          %s297 = scalar_lea.sflag [#allocation6], %s296
          %s298 = sand.u32 %s80, 1
          %s299 = smul.addr %s298, 512
          %s300 = scalar_lea.vmem [#allocation5], %s299
          %s302 = ssub.s32 8192, 8192
          %303 = vsyncadd %s297, %s302
          %s304 = smul.addr %s23, 128
          %s305 = smul.addr %s304, 64
          %s306 = scalar_lea.hbm %s2, %s305
          %s307 = sshll.u32 %s300, 4
          %s308 = int_to_ptr.vmem [resolvable:$true] %s307
          %313 = dma.hbm_to_vmem [thread:$0]  %s306, 8192, %s308, %s297, 128, 128, 8
        $region28: #{tpu_custom_call.1} parent=19 // pred_fallthru
          _
        // Predicated region
        $region29: #{tpu_custom_call.1} parent=19 // pred_check
          %p314 = pneg %p116
        $region30: #{tpu_custom_call.1} parent=19 // pred_check_branch
          %316 = sbr.rel (%p314) target = $region32
        $region31: #{tpu_custom_call.1} parent=19 // pred_region
          %p317 = scmp.lt.s32.totalorder %s23, 1
          %s318 = scalar_select %p317, %s23, 1
          %s319 = smul.addr %s318, 2
          %s320 = scalar_lea.vmem %s3, %s319
        $region32: #{tpu_custom_call.1} parent=19 // pred_fallthru
          _
        // Predicated region
        $region33: #{tpu_custom_call.1} parent=19 // pred_check
          %p321 = pneg %p142
        $region34: #{tpu_custom_call.1} parent=19 // pred_check_branch
          %323 = sbr.rel (%p321) target = $region36
        $region35: #{tpu_custom_call.1} parent=19 // pred_region
          %s324 = sand.u32 %s23, 1
          %s325 = scalar_lea.sflag [#allocation6], %s324
          %s326 = sand.u32 %s132, 1
          %s327 = smul.addr %s326, 128
          %s328 = scalar_lea.vmem [#allocation7], %s327
          %s330 = ssub.s32 2048, 2048
          %331 = vsyncadd %s325, %s330
          %s332 = smul.addr %s23, 32
          %s333 = smul.addr %s332, 64
          %s334 = scalar_lea.hbm %s4, %s333
          %s335 = sshll.u32 %s328, 4
          %s336 = int_to_ptr.vmem [resolvable:$true] %s335
          %341 = dma.hbm_to_vmem [thread:$0]  %s334, 2048, %s336, %s325, 64, 64, 4
        $region36: #{tpu_custom_call.1} parent=19 // pred_fallthru
          _
        // Predicated region
        $region37: #{tpu_custom_call.1} parent=19 // pred_check
          %p342 = pneg %p168
        $region38: #{tpu_custom_call.1} parent=19 // pred_check_branch
          %344 = sbr.rel (%p342) target = $region40
        $region39: #{tpu_custom_call.1} parent=19 // pred_region
          %p345 = scmp.lt.s32.totalorder %s23, 1
          %s346 = scalar_select %p345, %s23, 1
          %s347 = scalar_lea.vmem %s5, %s346
        $region40: #{tpu_custom_call.1} parent=19 // pred_fallthru
          _
        // Predicated region
        $region41: #{tpu_custom_call.1} parent=19 // pred_check
          %p348 = pneg %p194
        $region42: #{tpu_custom_call.1} parent=19 // pred_check_branch
          %350 = sbr.rel (%p348) target = $region44
        $region43: #{tpu_custom_call.1} parent=19 // pred_region
          %p351 = scmp.lt.s32.totalorder %s23, 1
          %s352 = scalar_select %p351, %s23, 1
          %s353 = smul.addr %s352, 4
          %s354 = scalar_lea.vmem %s6, %s353
        $region44: #{tpu_custom_call.1} parent=19 // pred_fallthru
          _
        // Predicated region
        $region45: #{tpu_custom_call.1} parent=19 // pred_check
          %p355 = pneg %p220
        $region46: #{tpu_custom_call.1} parent=19 // pred_check_branch
          %357 = sbr.rel (%p355) target = $region48
        $region47: #{tpu_custom_call.1} parent=19 // pred_region
          %p358 = scmp.lt.s32.totalorder %s23, 1
          %s359 = scalar_select %p358, %s23, 1
          %s360 = smul.addr %s359, 8
          %s361 = scalar_lea.vmem %s7, %s360
        $region48: #{tpu_custom_call.1} parent=19 // pred_fallthru
          _
      $region20: #{tpu_custom_call.1} parent=5 // pred_fallthru
        _
      %p362 = scmp.le.s32.totalorder 1, %s23
      %p363 = scmp.lt.s32.totalorder %s23, 3
      %p364 = pnand %p362, %p363
      %p365 = pneg %p364
      // Predicated region
      $region49: #{tpu_custom_call.1} parent=5 // pred_check
        _
      $region50: #{tpu_custom_call.1} parent=5 // pred_check_branch
        %367 = sbr.rel (%p364) target = $region52
      $region51: #{tpu_custom_call.1} parent=5 // pred_region
        %s368 = ssub.s32 %s23, 1
        %s369 = sand.u32 %s57, 1
        %s370 = scalar_lea.sflag [#allocation3], %s369
        %s371 = sand.u32 %s57, 1
        %s372 = smul.addr %s371, 32
        %s373 = scalar_lea.vmem [#allocation2], %s372
        // Predicated region
        $region53: #{tpu_custom_call.1} parent=51 // pred_check
          %p374 = pneg %p70
        $region54: #{tpu_custom_call.1} parent=51 // pred_check_branch
          %376 = sbr.rel (%p374) target = $region56
        $region55: #{tpu_custom_call.1} parent=51 // pred_region
          %377 = dma.done %s370, 512
        $region56: #{tpu_custom_call.1} parent=51 // pred_fallthru
          _
        %s378 = sand.u32 %s28, 1
        %s379 = scalar_lea.sflag [#allocation6], %s378
        %s380 = sand.u32 %s83, 1
        %s381 = smul.addr %s380, 512
        %s382 = scalar_lea.vmem [#allocation5], %s381
        // Predicated region
        $region57: #{tpu_custom_call.1} parent=51 // pred_check
          %p383 = pneg %p96
        $region58: #{tpu_custom_call.1} parent=51 // pred_check_branch
          %385 = sbr.rel (%p383) target = $region60
        $region59: #{tpu_custom_call.1} parent=51 // pred_region
          %386 = dma.done %s379, 8192
        $region60: #{tpu_custom_call.1} parent=51 // pred_fallthru
          _
        %s387 = sand.u32 %s28, 1
        %s388 = scalar_lea.sflag [#allocation6], %s387
        %s389 = sand.u32 %s135, 1
        %s390 = smul.addr %s389, 128
        %s391 = scalar_lea.vmem [#allocation7], %s390
        // Predicated region
        $region61: #{tpu_custom_call.1} parent=51 // pred_check
          %p392 = pneg %p148
        $region62: #{tpu_custom_call.1} parent=51 // pred_check_branch
          %394 = sbr.rel (%p392) target = $region64
        $region63: #{tpu_custom_call.1} parent=51 // pred_region
          %395 = dma.done %s388, 2048
        $region64: #{tpu_custom_call.1} parent=51 // pred_fallthru
          _
        %p396 = pneg %p44
        %p397 = pneg %p41
        %s398 = sand.u32 %s57, 1
        %s399 = scalar_lea.sflag [#allocation3], %s398
        %s400 = sand.u32 %s57, 1
        %s401 = smul.addr %s400, 32
        %s402 = scalar_lea.vmem [#allocation2], %s401
        %p403 = pneg %p70
        %p404 = pneg %p67
        %s405 = sand.u32 %s28, 1
        %s406 = scalar_lea.sflag [#allocation6], %s405
        %s407 = sand.u32 %s83, 1
        %s408 = smul.addr %s407, 512
        %s409 = scalar_lea.vmem [#allocation5], %s408
        %p410 = pneg %p96
        %p411 = pneg %p93
        %p412 = scmp.lt.s32.totalorder %s28, 1
        %s413 = scalar_select %p412, %s28, 1
        %s414 = smul.addr %s413, 2
        %s415 = scalar_lea.vmem %s3, %s414
        %p416 = pneg %p122
        %p417 = pneg %p119
        %s418 = sand.u32 %s28, 1
        %s419 = scalar_lea.sflag [#allocation6], %s418
        %s420 = sand.u32 %s135, 1
        %s421 = smul.addr %s420, 128
        %s422 = scalar_lea.vmem [#allocation7], %s421
        %p423 = pneg %p148
        %p424 = pneg %p145
        %p425 = scmp.lt.s32.totalorder %s28, 1
        %s426 = scalar_select %p425, %s28, 1
        %s427 = scalar_lea.vmem %s5, %s426
        %p428 = pneg %p174
        %p429 = pneg %p171
        %p430 = scmp.lt.s32.totalorder %s28, 1
        %s431 = scalar_select %p430, %s28, 1
        %s432 = smul.addr %s431, 4
        %s433 = scalar_lea.vmem %s6, %s432
        %p434 = pneg %p200
        %p435 = pneg %p197
        %p436 = scmp.lt.s32.totalorder %s28, 1
        %s437 = scalar_select %p436, %s28, 1
        %s438 = smul.addr %s437, 8
        %s439 = scalar_lea.vmem %s7, %s438
        %p440 = pneg %p226
        %p441 = pneg %p223
        %p442 = pneg %p252
        %p443 = pneg %p249
        %s444 = sand.u32 %s239, 1
        %s445 = scalar_lea.sflag [#allocation4], %s444
        %s446 = sand.u32 %s239, 1
        %s447 = smul.addr %s446, 8
        %s448 = scalar_lea.vmem [#allocation8], %s447
        %p449 = scmp.lt.s32.totalorder %s28, 1
        %s450 = scalar_select %p449, %s28, 1
        %s451 = smul.addr %s450, 2
        %s452 = scalar_lea.vmem %s3, %s451
        %p453 = scmp.lt.s32.totalorder %s28, 1
        %s454 = scalar_select %p453, %s28, 1
        %s455 = scalar_lea.vmem %s5, %s454
        %p456 = scmp.lt.s32.totalorder %s28, 1
        %s457 = scalar_select %p456, %s28, 1
        %s458 = smul.addr %s457, 4
        %s459 = scalar_lea.vmem %s6, %s458
        %p460 = scmp.lt.s32.totalorder %s28, 1
        %s461 = scalar_select %p460, %s28, 1
        %s462 = smul.addr %s461, 8
        %s463 = scalar_lea.vmem %s7, %s462
        %v465 = vld [vmem:[%s0] sm:$0xff]
        %v466 = vld [vmem:[%s0 + $0x8] sm:$0xff]
        %v467 = vld [vmem:[%s373] sm:$0xff]
        %v468 = vld [vmem:[%s373 + $0x8] sm:$0xff]
        %v469 = vld [vmem:[%s373 + $0x10] sm:$0xff]
        %v470 = vld [vmem:[%s373 + $0x18] sm:$0xff]
        %472 = vset.pattern.permute.xlu0 0
        %473 = vperm.xlu0 %472, %v465
        %v474 = vpop.permute.xlu0 %473
        %477 = vset.pattern.permute.xlu0 0
        %478 = vperm.xlu0 %477, %v466
        %v479 = vpop.permute.xlu0 %478
        %v481 = vlaneseq
        %v482 = vshrl.u32 %v481, 7
        %v483 = vsub.s32 0, %v482
        %v484 = vrot.slane %v467, %v483
        %v485 = vlaneseq
        %v486 = vshrl.u32 %v485, 7
        %v487 = vsub.s32 0, %v486
        %v488 = vrot.slane %v468, %v487
        %v489 = vlaneseq
        %v490 = vshrl.u32 %v489, 7
        %v491 = vsub.s32 0, %v490
        %v492 = vrot.slane %v469, %v491
        %v493 = vlaneseq
        %v494 = vshrl.u32 %v493, 7
        %v495 = vsub.s32 0, %v494
        %v496 = vrot.slane %v470, %v495
        %v497 = vmul.f32 %v474, %v484
        %v498 = vmul.f32 %v474, %v488
        %v499 = vmul.f32 %v474, %v492
        %v500 = vmul.f32 %v474, %v496
        %v501 = vmul.f32 %v479, %v484
        %v502 = vmul.f32 %v479, %v488
        %v503 = vmul.f32 %v479, %v492
        %v504 = vmul.f32 %v479, %v496
        %505 = vset.pattern.permute.xlu0 1
        %506 = vperm.xlu0 %505, %v465
        %v507 = vpop.permute.xlu0 %506
        %509 = vset.pattern.permute.xlu0 1
        %510 = vperm.xlu0 %509, %v466
        %v511 = vpop.permute.xlu0 %510
        %v513 = vlaneseq
        %v514 = vshrl.u32 %v513, 7
        %v515 = vsub.s32 1, %v514
        %v516 = vrot.slane %v467, %v515
        %v517 = vlaneseq
        %v518 = vshrl.u32 %v517, 7
        %v519 = vsub.s32 1, %v518
        %v520 = vrot.slane %v468, %v519
        %v521 = vlaneseq
        %v522 = vshrl.u32 %v521, 7
        %v523 = vsub.s32 1, %v522
        %v524 = vrot.slane %v469, %v523
        %v525 = vlaneseq
        %v526 = vshrl.u32 %v525, 7
        %v527 = vsub.s32 1, %v526
        %v528 = vrot.slane %v470, %v527
        %v529 = vmul.f32 %v507, %v516
        %v530 = vmul.f32 %v507, %v520
        %v531 = vmul.f32 %v507, %v524
        %v532 = vmul.f32 %v507, %v528
        %v533 = vmul.f32 %v511, %v516
        %v534 = vmul.f32 %v511, %v520
        %v535 = vmul.f32 %v511, %v524
        %v536 = vmul.f32 %v511, %v528
        %v537 = vadd.f32 %v497, %v529
        %v538 = vadd.f32 %v498, %v530
        %v539 = vadd.f32 %v499, %v531
        %v540 = vadd.f32 %v500, %v532
        %v541 = vadd.f32 %v501, %v533
        %v542 = vadd.f32 %v502, %v534
        %v543 = vadd.f32 %v503, %v535
        %v544 = vadd.f32 %v504, %v536
        %v545 = vlaneseq
        %v546 = vshrl.u32 %v545, 7
        %v547 = vsub.s32 2, %v546
        %v548 = vrot.slane %v467, %v547
        %v549 = vlaneseq
        %v550 = vshrl.u32 %v549, 7
        %v551 = vsub.s32 2, %v550
        %v552 = vrot.slane %v468, %v551
        %v553 = vlaneseq
        %v554 = vshrl.u32 %v553, 7
        %v555 = vsub.s32 2, %v554
        %v556 = vrot.slane %v469, %v555
        %v557 = vlaneseq
        %v558 = vshrl.u32 %v557, 7
        %v559 = vsub.s32 2, %v558
        %v560 = vrot.slane %v470, %v559
        %v561 = vadd.f32 %v537, %v548
        %v562 = vadd.f32 %v538, %v552
        %v563 = vadd.f32 %v539, %v556
        %v564 = vadd.f32 %v540, %v560
        %v565 = vadd.f32 %v541, %v548
        %v566 = vadd.f32 %v542, %v552
        %v567 = vadd.f32 %v543, %v556
        %v568 = vadd.f32 %v544, %v560
        %v569 = vmax.f32 %v561, 0.0
        %v570 = vmax.f32 %v562, 0.0
        %v571 = vmax.f32 %v563, 0.0
        %v572 = vmax.f32 %v564, 0.0
        %v573 = vmax.f32 %v565, 0.0
        %v574 = vmax.f32 %v566, 0.0
        %v575 = vmax.f32 %v567, 0.0
        %v576 = vmax.f32 %v568, 0.0
        %v577 = vpack.c.bf16 %v573, %v569
        %v578 = vpack.c.bf16 %v574, %v570
        %v579 = vpack.c.bf16 %v575, %v571
        %v580 = vpack.c.bf16 %v576, %v572
        %v581 = vld [vmem:[%s382] sm:$0xff]
        %v582 = vld [vmem:[%s382 + $0x8] sm:$0xff]
        %v583 = vld [vmem:[%s382 + $0x10] sm:$0xff]
        %v584 = vld [vmem:[%s382 + $0x18] sm:$0xff]
        %v585 = vld [vmem:[%s382 + $0x20] sm:$0xff]
        %v586 = vld [vmem:[%s382 + $0x28] sm:$0xff]
        %v587 = vld [vmem:[%s382 + $0x30] sm:$0xff]
        %v588 = vld [vmem:[%s382 + $0x38] sm:$0xff]
        %v589 = vld [vmem:[%s382 + $0x40] sm:$0xff]
        %v590 = vld [vmem:[%s382 + $0x48] sm:$0xff]
        %v591 = vld [vmem:[%s382 + $0x50] sm:$0xff]
        %v592 = vld [vmem:[%s382 + $0x58] sm:$0xff]
        %v593 = vld [vmem:[%s382 + $0x60] sm:$0xff]
        %v594 = vld [vmem:[%s382 + $0x68] sm:$0xff]
        %v595 = vld [vmem:[%s382 + $0x70] sm:$0xff]
        %v596 = vld [vmem:[%s382 + $0x78] sm:$0xff]
        %v597 = vld [vmem:[%s382 + $0x80] sm:$0xff]
        %v598 = vld [vmem:[%s382 + $0x88] sm:$0xff]
        %v599 = vld [vmem:[%s382 + $0x90] sm:$0xff]
        %v600 = vld [vmem:[%s382 + $0x98] sm:$0xff]
        %v601 = vld [vmem:[%s382 + $0xa0] sm:$0xff]
        %v602 = vld [vmem:[%s382 + $0xa8] sm:$0xff]
        %v603 = vld [vmem:[%s382 + $0xb0] sm:$0xff]
        %v604 = vld [vmem:[%s382 + $0xb8] sm:$0xff]
        %v605 = vld [vmem:[%s382 + $0xc0] sm:$0xff]
        %v606 = vld [vmem:[%s382 + $0xc8] sm:$0xff]
        %v607 = vld [vmem:[%s382 + $0xd0] sm:$0xff]
        %v608 = vld [vmem:[%s382 + $0xd8] sm:$0xff]
        %v609 = vld [vmem:[%s382 + $0xe0] sm:$0xff]
        %v610 = vld [vmem:[%s382 + $0xe8] sm:$0xff]
        %v611 = vld [vmem:[%s382 + $0xf0] sm:$0xff]
        %v612 = vld [vmem:[%s382 + $0xf8] sm:$0xff]
        %v613 = vld [vmem:[%s382 + $0x100] sm:$0xff]
        %v614 = vld [vmem:[%s382 + $0x108] sm:$0xff]
        %v615 = vld [vmem:[%s382 + $0x110] sm:$0xff]
        %v616 = vld [vmem:[%s382 + $0x118] sm:$0xff]
        %v617 = vld [vmem:[%s382 + $0x120] sm:$0xff]
        %v618 = vld [vmem:[%s382 + $0x128] sm:$0xff]
        %v619 = vld [vmem:[%s382 + $0x130] sm:$0xff]
        %v620 = vld [vmem:[%s382 + $0x138] sm:$0xff]
        %v621 = vld [vmem:[%s382 + $0x140] sm:$0xff]
        %v622 = vld [vmem:[%s382 + $0x148] sm:$0xff]
        %v623 = vld [vmem:[%s382 + $0x150] sm:$0xff]
        %v624 = vld [vmem:[%s382 + $0x158] sm:$0xff]
        %v625 = vld [vmem:[%s382 + $0x160] sm:$0xff]
        %v626 = vld [vmem:[%s382 + $0x168] sm:$0xff]
        %v627 = vld [vmem:[%s382 + $0x170] sm:$0xff]
        %v628 = vld [vmem:[%s382 + $0x178] sm:$0xff]
        %v629 = vld [vmem:[%s382 + $0x180] sm:$0xff]
        %v630 = vld [vmem:[%s382 + $0x188] sm:$0xff]
        %v631 = vld [vmem:[%s382 + $0x190] sm:$0xff]
        %v632 = vld [vmem:[%s382 + $0x198] sm:$0xff]
        %v633 = vld [vmem:[%s382 + $0x1a0] sm:$0xff]
        %v634 = vld [vmem:[%s382 + $0x1a8] sm:$0xff]
        %v635 = vld [vmem:[%s382 + $0x1b0] sm:$0xff]
        %v636 = vld [vmem:[%s382 + $0x1b8] sm:$0xff]
        %v637 = vld [vmem:[%s382 + $0x1c0] sm:$0xff]
        %v638 = vld [vmem:[%s382 + $0x1c8] sm:$0xff]
        %v639 = vld [vmem:[%s382 + $0x1d0] sm:$0xff]
        %v640 = vld [vmem:[%s382 + $0x1d8] sm:$0xff]
        %v641 = vld [vmem:[%s382 + $0x1e0] sm:$0xff]
        %v642 = vld [vmem:[%s382 + $0x1e8] sm:$0xff]
        %v643 = vld [vmem:[%s382 + $0x1f0] sm:$0xff]
        %v644 = vld [vmem:[%s382 + $0x1f8] sm:$0xff]
        %v645 = vld [vmem:[%s452] sm:$0x3]
        %v647 = vlaneseq
        %v648 = vshrl.u32 %v647, 7
        %v649 = vsub.s32 0, %v648
        %v650 = vrot.slane %v645, %v649
        %v651 = vlaneseq
        %v652 = vshrl.u32 %v651, 7
        %v653 = vsub.s32 1, %v652
        %v654 = vrot.slane %v645, %v653
        %v721 = vunpack.c.l.b16 %v581
        %v722 = vunpack.c.h.b16 %v581
        %v723 = vunpack.c.l.b16 %v582
        %v724 = vunpack.c.h.b16 %v582
        %v725 = vunpack.c.l.b16 %v583
        %v726 = vunpack.c.h.b16 %v583
        %v727 = vunpack.c.l.b16 %v584
        %v728 = vunpack.c.h.b16 %v584
        %v729 = vunpack.c.l.b16 %v585
        %v730 = vunpack.c.h.b16 %v585
        %v731 = vunpack.c.l.b16 %v586
        %v732 = vunpack.c.h.b16 %v586
        %v733 = vunpack.c.l.b16 %v587
        %v734 = vunpack.c.h.b16 %v587
        %v735 = vunpack.c.l.b16 %v588
        %v736 = vunpack.c.h.b16 %v588
        %v737 = vunpack.c.l.b16 %v589
        %v738 = vunpack.c.h.b16 %v589
        %v739 = vunpack.c.l.b16 %v590
        %v740 = vunpack.c.h.b16 %v590
        %v741 = vunpack.c.l.b16 %v591
        %v742 = vunpack.c.h.b16 %v591
        %v743 = vunpack.c.l.b16 %v592
        %v744 = vunpack.c.h.b16 %v592
        %v745 = vunpack.c.l.b16 %v593
        %v746 = vunpack.c.h.b16 %v593
        %v747 = vunpack.c.l.b16 %v594
        %v748 = vunpack.c.h.b16 %v594
        %v749 = vunpack.c.l.b16 %v595
        %v750 = vunpack.c.h.b16 %v595
        %v751 = vunpack.c.l.b16 %v596
        %v752 = vunpack.c.h.b16 %v596
        %v753 = vunpack.c.l.b16 %v597
        %v754 = vunpack.c.h.b16 %v597
        %v755 = vunpack.c.l.b16 %v598
        %v756 = vunpack.c.h.b16 %v598
        %v757 = vunpack.c.l.b16 %v599
        %v758 = vunpack.c.h.b16 %v599
        %v759 = vunpack.c.l.b16 %v600
        %v760 = vunpack.c.h.b16 %v600
        %v761 = vunpack.c.l.b16 %v601
        %v762 = vunpack.c.h.b16 %v601
        %v763 = vunpack.c.l.b16 %v602
        %v764 = vunpack.c.h.b16 %v602
        %v765 = vunpack.c.l.b16 %v603
        %v766 = vunpack.c.h.b16 %v603
        %v767 = vunpack.c.l.b16 %v604
        %v768 = vunpack.c.h.b16 %v604
        %v769 = vunpack.c.l.b16 %v605
        %v770 = vunpack.c.h.b16 %v605
        %v771 = vunpack.c.l.b16 %v606
        %v772 = vunpack.c.h.b16 %v606
        %v773 = vunpack.c.l.b16 %v607
        %v774 = vunpack.c.h.b16 %v607
        %v775 = vunpack.c.l.b16 %v608
        %v776 = vunpack.c.h.b16 %v608
        %v777 = vunpack.c.l.b16 %v609
        %v778 = vunpack.c.h.b16 %v609
        %v779 = vunpack.c.l.b16 %v610
        %v780 = vunpack.c.h.b16 %v610
        %v781 = vunpack.c.l.b16 %v611
        %v782 = vunpack.c.h.b16 %v611
        %v783 = vunpack.c.l.b16 %v612
        %v784 = vunpack.c.h.b16 %v612
        %v785 = vunpack.c.l.b16 %v613
        %v786 = vunpack.c.h.b16 %v613
        %v787 = vunpack.c.l.b16 %v614
        %v788 = vunpack.c.h.b16 %v614
        %v789 = vunpack.c.l.b16 %v615
        %v790 = vunpack.c.h.b16 %v615
        %v791 = vunpack.c.l.b16 %v616
        %v792 = vunpack.c.h.b16 %v616
        %v793 = vunpack.c.l.b16 %v617
        %v794 = vunpack.c.h.b16 %v617
        %v795 = vunpack.c.l.b16 %v618
        %v796 = vunpack.c.h.b16 %v618
        %v797 = vunpack.c.l.b16 %v619
        %v798 = vunpack.c.h.b16 %v619
        %v799 = vunpack.c.l.b16 %v620
        %v800 = vunpack.c.h.b16 %v620
        %v801 = vunpack.c.l.b16 %v621
        %v802 = vunpack.c.h.b16 %v621
        %v803 = vunpack.c.l.b16 %v622
        %v804 = vunpack.c.h.b16 %v622
        %v805 = vunpack.c.l.b16 %v623
        %v806 = vunpack.c.h.b16 %v623
        %v807 = vunpack.c.l.b16 %v624
        %v808 = vunpack.c.h.b16 %v624
        %v809 = vunpack.c.l.b16 %v625
        %v810 = vunpack.c.h.b16 %v625
        %v811 = vunpack.c.l.b16 %v626
        %v812 = vunpack.c.h.b16 %v626
        %v813 = vunpack.c.l.b16 %v627
        %v814 = vunpack.c.h.b16 %v627
        %v815 = vunpack.c.l.b16 %v628
        %v816 = vunpack.c.h.b16 %v628
        %v817 = vunpack.c.l.b16 %v629
        %v818 = vunpack.c.h.b16 %v629
        %v819 = vunpack.c.l.b16 %v630
        %v820 = vunpack.c.h.b16 %v630
        %v821 = vunpack.c.l.b16 %v631
        %v822 = vunpack.c.h.b16 %v631
        %v823 = vunpack.c.l.b16 %v632
        %v824 = vunpack.c.h.b16 %v632
        %v825 = vunpack.c.l.b16 %v633
        %v826 = vunpack.c.h.b16 %v633
        %v827 = vunpack.c.l.b16 %v634
        %v828 = vunpack.c.h.b16 %v634
        %v829 = vunpack.c.l.b16 %v635
        %v830 = vunpack.c.h.b16 %v635
        %v831 = vunpack.c.l.b16 %v636
        %v832 = vunpack.c.h.b16 %v636
        %v833 = vunpack.c.l.b16 %v637
        %v834 = vunpack.c.h.b16 %v637
        %v835 = vunpack.c.l.b16 %v638
        %v836 = vunpack.c.h.b16 %v638
        %v837 = vunpack.c.l.b16 %v639
        %v838 = vunpack.c.h.b16 %v639
        %v839 = vunpack.c.l.b16 %v640
        %v840 = vunpack.c.h.b16 %v640
        %v841 = vunpack.c.l.b16 %v641
        %v842 = vunpack.c.h.b16 %v641
        %v843 = vunpack.c.l.b16 %v642
        %v844 = vunpack.c.h.b16 %v642
        %v845 = vunpack.c.l.b16 %v643
        %v846 = vunpack.c.h.b16 %v643
        %v847 = vunpack.c.l.b16 %v644
        %v848 = vunpack.c.h.b16 %v644
        %v849 = vpack.c.b16 %v723, %v721
        %v850 = vpack.c.b16 %v724, %v722
        %v851 = vpack.c.b16 %v727, %v725
        %v852 = vpack.c.b16 %v728, %v726
        %v853 = vpack.c.b16 %v731, %v729
        %v854 = vpack.c.b16 %v732, %v730
        %v855 = vpack.c.b16 %v735, %v733
        %v856 = vpack.c.b16 %v736, %v734
        %v857 = vpack.c.b16 %v739, %v737
        %v858 = vpack.c.b16 %v740, %v738
        %v859 = vpack.c.b16 %v743, %v741
        %v860 = vpack.c.b16 %v744, %v742
        %v861 = vpack.c.b16 %v747, %v745
        %v862 = vpack.c.b16 %v748, %v746
        %v863 = vpack.c.b16 %v751, %v749
        %v864 = vpack.c.b16 %v752, %v750
        %v865 = vpack.c.b16 %v755, %v753
        %v866 = vpack.c.b16 %v756, %v754
        %v867 = vpack.c.b16 %v759, %v757
        %v868 = vpack.c.b16 %v760, %v758
        %v869 = vpack.c.b16 %v763, %v761
        %v870 = vpack.c.b16 %v764, %v762
        %v871 = vpack.c.b16 %v767, %v765
        %v872 = vpack.c.b16 %v768, %v766
        %v873 = vpack.c.b16 %v771, %v769
        %v874 = vpack.c.b16 %v772, %v770
        %v875 = vpack.c.b16 %v775, %v773
        %v876 = vpack.c.b16 %v776, %v774
        %v877 = vpack.c.b16 %v779, %v777
        %v878 = vpack.c.b16 %v780, %v778
        %v879 = vpack.c.b16 %v783, %v781
        %v880 = vpack.c.b16 %v784, %v782
        %v881 = vpack.c.b16 %v787, %v785
        %v882 = vpack.c.b16 %v788, %v786
        %v883 = vpack.c.b16 %v791, %v789
        %v884 = vpack.c.b16 %v792, %v790
        %v885 = vpack.c.b16 %v795, %v793
        %v886 = vpack.c.b16 %v796, %v794
        %v887 = vpack.c.b16 %v799, %v797
        %v888 = vpack.c.b16 %v800, %v798
        %v889 = vpack.c.b16 %v803, %v801
        %v890 = vpack.c.b16 %v804, %v802
        %v891 = vpack.c.b16 %v807, %v805
        %v892 = vpack.c.b16 %v808, %v806
        %v893 = vpack.c.b16 %v811, %v809
        %v894 = vpack.c.b16 %v812, %v810
        %v895 = vpack.c.b16 %v815, %v813
        %v896 = vpack.c.b16 %v816, %v814
        %v897 = vpack.c.b16 %v819, %v817
        %v898 = vpack.c.b16 %v820, %v818
        %v899 = vpack.c.b16 %v823, %v821
        %v900 = vpack.c.b16 %v824, %v822
        %v901 = vpack.c.b16 %v827, %v825
        %v902 = vpack.c.b16 %v828, %v826
        %v903 = vpack.c.b16 %v831, %v829
        %v904 = vpack.c.b16 %v832, %v830
        %v905 = vpack.c.b16 %v835, %v833
        %v906 = vpack.c.b16 %v836, %v834
        %v907 = vpack.c.b16 %v839, %v837
        %v908 = vpack.c.b16 %v840, %v838
        %v909 = vpack.c.b16 %v843, %v841
        %v910 = vpack.c.b16 %v844, %v842
        %v911 = vpack.c.b16 %v847, %v845
        %v912 = vpack.c.b16 %v848, %v846
        %977 = vmatprep.subr.bf16.mxu0 %v850
        %978 = vmatpush1.bf16.msra.mxu0 %v849
        %979 = vmatprep.subr.bf16.mxu0 %v852
        %980 = vmatpush1.bf16.msra.mxu0 %v851
        %981 = vmatprep.subr.bf16.mxu0 %v854
        %982 = vmatpush1.bf16.msra.mxu0 %v853
        %983 = vmatprep.subr.bf16.mxu0 %v856
        %984 = vmatpush1.bf16.msra.mxu0 %v855
        %985 = vmatprep.subr.bf16.mxu0 %v858
        %986 = vmatpush1.bf16.msra.mxu0 %v857
        %987 = vmatprep.subr.bf16.mxu0 %v860
        %988 = vmatpush1.bf16.msra.mxu0 %v859
        %989 = vmatprep.subr.bf16.mxu0 %v862
        %990 = vmatpush1.bf16.msra.mxu0 %v861
        %991 = vmatprep.subr.bf16.mxu0 %v864
        %992 = vmatpush1.bf16.msra.mxu0 %v863
        %993 = vmatprep.subr.bf16.mxu0 %v866
        %994 = vmatpush1.bf16.msra.mxu0 %v865
        %995 = vmatprep.subr.bf16.mxu0 %v868
        %996 = vmatpush1.bf16.msra.mxu0 %v867
        %997 = vmatprep.subr.bf16.mxu0 %v870
        %998 = vmatpush1.bf16.msra.mxu0 %v869
        %999 = vmatprep.subr.bf16.mxu0 %v872
        %1000 = vmatpush1.bf16.msra.mxu0 %v871
        %1001 = vmatprep.subr.bf16.mxu0 %v874
        %1002 = vmatpush1.bf16.msra.mxu0 %v873
        %1003 = vmatprep.subr.bf16.mxu0 %v876
        %1004 = vmatpush1.bf16.msra.mxu0 %v875
        %1005 = vmatprep.subr.bf16.mxu0 %v878
        %1006 = vmatpush1.bf16.msra.mxu0 %v877
        %1007 = vmatprep.subr.bf16.mxu0 %v880
        %1008 = vmatpush1.bf16.msra.mxu0 %v879
        %1009 = vmatprep.mubr.bf16.mxu0 %v578
        %1010 = vmatmul.mubr.bf16.gmra.mrb[0].mxu0 %v577
        %v1011 = vpop.f32.mrb[0].mxu0
        %v1012 = vadd.f32 %v650, %v1011
        %v1013 = vpop.f32.mrb[0].mxu0
        %v1014 = vadd.f32 %v654, %v1013
        %v1015 = vpop.f32.mrb[0].mxu0
        %v1016 = vadd.f32 %v650, %v1015
        %v1017 = vpop.f32.mrb[0].mxu0
        %v1018 = vadd.f32 %v654, %v1017
        %1019 = vdwg.mxu0
        %1020 = vmatprep.subr.bf16.mxu0 %v882
        %1021 = vmatpush1.bf16.msra.mxu0 %v881
        %1022 = vmatprep.subr.bf16.mxu0 %v884
        %1023 = vmatpush1.bf16.msra.mxu0 %v883
        %1024 = vmatprep.subr.bf16.mxu0 %v886
        %1025 = vmatpush1.bf16.msra.mxu0 %v885
        %1026 = vmatprep.subr.bf16.mxu0 %v888
        %1027 = vmatpush1.bf16.msra.mxu0 %v887
        %1028 = vmatprep.subr.bf16.mxu0 %v890
        %1029 = vmatpush1.bf16.msra.mxu0 %v889
        %1030 = vmatprep.subr.bf16.mxu0 %v892
        %1031 = vmatpush1.bf16.msra.mxu0 %v891
        %1032 = vmatprep.subr.bf16.mxu0 %v894
        %1033 = vmatpush1.bf16.msra.mxu0 %v893
        %1034 = vmatprep.subr.bf16.mxu0 %v896
        %1035 = vmatpush1.bf16.msra.mxu0 %v895
        %1036 = vmatprep.subr.bf16.mxu0 %v898
        %1037 = vmatpush1.bf16.msra.mxu0 %v897
        %1038 = vmatprep.subr.bf16.mxu0 %v900
        %1039 = vmatpush1.bf16.msra.mxu0 %v899
        %1040 = vmatprep.subr.bf16.mxu0 %v902
        %1041 = vmatpush1.bf16.msra.mxu0 %v901
        %1042 = vmatprep.subr.bf16.mxu0 %v904
        %1043 = vmatpush1.bf16.msra.mxu0 %v903
        %1044 = vmatprep.subr.bf16.mxu0 %v906
        %1045 = vmatpush1.bf16.msra.mxu0 %v905
        %1046 = vmatprep.subr.bf16.mxu0 %v908
        %1047 = vmatpush1.bf16.msra.mxu0 %v907
        %1048 = vmatprep.subr.bf16.mxu0 %v910
        %1049 = vmatpush1.bf16.msra.mxu0 %v909
        %1050 = vmatprep.subr.bf16.mxu0 %v912
        %1051 = vmatpush1.bf16.msra.mxu0 %v911
        %1052 = vmatprep.mubr.bf16.mxu0 %v580
        %1053 = vmatmul.mubr.bf16.gmra.mrb[0].mxu0 %v579
        %v1054 = vpop.f32.mrb[0].mxu0
        %v1055 = vadd.f32 %v1012, %v1054
        %v1056 = vpop.f32.mrb[0].mxu0
        %v1057 = vadd.f32 %v1014, %v1056
        %v1058 = vpop.f32.mrb[0].mxu0
        %v1059 = vadd.f32 %v1016, %v1058
        %v1060 = vpop.f32.mrb[0].mxu0
        %v1061 = vadd.f32 %v1018, %v1060
        %1062 = vdwg.mxu0
        %v1063 = vmax.f32 %v1055, 0.0
        %v1064 = vmax.f32 %v1057, 0.0
        %v1065 = vmax.f32 %v1059, 0.0
        %v1066 = vmax.f32 %v1061, 0.0
        %v1067 = vpack.c.bf16 %v1065, %v1063
        %v1068 = vpack.c.bf16 %v1066, %v1064
        %v1069 = vld [vmem:[%s391] sm:$0xf]
        %v1070 = vld [vmem:[%s391 + $0x4] sm:$0xf]
        %v1071 = vld [vmem:[%s391 + $0x8] sm:$0xf]
        %v1072 = vld [vmem:[%s391 + $0xc] sm:$0xf]
        %v1073 = vld [vmem:[%s391 + $0x10] sm:$0xf]
        %v1074 = vld [vmem:[%s391 + $0x14] sm:$0xf]
        %v1075 = vld [vmem:[%s391 + $0x18] sm:$0xf]
        %v1076 = vld [vmem:[%s391 + $0x1c] sm:$0xf]
        %v1077 = vld [vmem:[%s391 + $0x20] sm:$0xf]
        %v1078 = vld [vmem:[%s391 + $0x24] sm:$0xf]
        %v1079 = vld [vmem:[%s391 + $0x28] sm:$0xf]
        %v1080 = vld [vmem:[%s391 + $0x2c] sm:$0xf]
        %v1081 = vld [vmem:[%s391 + $0x30] sm:$0xf]
        %v1082 = vld [vmem:[%s391 + $0x34] sm:$0xf]
        %v1083 = vld [vmem:[%s391 + $0x38] sm:$0xf]
        %v1084 = vld [vmem:[%s391 + $0x3c] sm:$0xf]
        %v1085 = vld [vmem:[%s391 + $0x40] sm:$0xf]
        %v1086 = vld [vmem:[%s391 + $0x44] sm:$0xf]
        %v1087 = vld [vmem:[%s391 + $0x48] sm:$0xf]
        %v1088 = vld [vmem:[%s391 + $0x4c] sm:$0xf]
        %v1089 = vld [vmem:[%s391 + $0x50] sm:$0xf]
        %v1090 = vld [vmem:[%s391 + $0x54] sm:$0xf]
        %v1091 = vld [vmem:[%s391 + $0x58] sm:$0xf]
        %v1092 = vld [vmem:[%s391 + $0x5c] sm:$0xf]
        %v1093 = vld [vmem:[%s391 + $0x60] sm:$0xf]
        %v1094 = vld [vmem:[%s391 + $0x64] sm:$0xf]
        %v1095 = vld [vmem:[%s391 + $0x68] sm:$0xf]
        %v1096 = vld [vmem:[%s391 + $0x6c] sm:$0xf]
        %v1097 = vld [vmem:[%s391 + $0x70] sm:$0xf]
        %v1098 = vld [vmem:[%s391 + $0x74] sm:$0xf]
        %v1099 = vld [vmem:[%s391 + $0x78] sm:$0xf]
        %v1100 = vld [vmem:[%s391 + $0x7c] sm:$0xf]
        %v1101 = vld [vmem:[%s455] sm:$0x1]
        %v1103 = vlaneseq
        %v1104 = vshrl.u32 %v1103, 7
        %v1105 = vsub.s32 0, %v1104
        %v1106 = vrot.slane %v1101, %v1105
        %v1140 = vunpack.c.l.b16 %v1069
        %v1141 = vunpack.c.l.b16 %v1070
        %v1142 = vunpack.c.l.b16 %v1071
        %v1143 = vunpack.c.l.b16 %v1072
        %v1144 = vunpack.c.l.b16 %v1073
        %v1145 = vunpack.c.l.b16 %v1074
        %v1146 = vunpack.c.l.b16 %v1075
        %v1147 = vunpack.c.l.b16 %v1076
        %v1148 = vunpack.c.l.b16 %v1077
        %v1149 = vunpack.c.l.b16 %v1078
        %v1150 = vunpack.c.l.b16 %v1079
        %v1151 = vunpack.c.l.b16 %v1080
        %v1152 = vunpack.c.l.b16 %v1081
        %v1153 = vunpack.c.l.b16 %v1082
        %v1154 = vunpack.c.l.b16 %v1083
        %v1155 = vunpack.c.l.b16 %v1084
        %v1156 = vunpack.c.l.b16 %v1085
        %v1157 = vunpack.c.l.b16 %v1086
        %v1158 = vunpack.c.l.b16 %v1087
        %v1159 = vunpack.c.l.b16 %v1088
        %v1160 = vunpack.c.l.b16 %v1089
        %v1161 = vunpack.c.l.b16 %v1090
        %v1162 = vunpack.c.l.b16 %v1091
        %v1163 = vunpack.c.l.b16 %v1092
        %v1164 = vunpack.c.l.b16 %v1093
        %v1165 = vunpack.c.l.b16 %v1094
        %v1166 = vunpack.c.l.b16 %v1095
        %v1167 = vunpack.c.l.b16 %v1096
        %v1168 = vunpack.c.l.b16 %v1097
        %v1169 = vunpack.c.l.b16 %v1098
        %v1170 = vunpack.c.l.b16 %v1099
        %v1171 = vunpack.c.l.b16 %v1100
        %v1172 = vpack.c.b16 %v1141, %v1140
        %v1173 = vpack.c.b16 %v1143, %v1142
        %v1174 = vpack.c.b16 %v1145, %v1144
        %v1175 = vpack.c.b16 %v1147, %v1146
        %v1176 = vpack.c.b16 %v1149, %v1148
        %v1177 = vpack.c.b16 %v1151, %v1150
        %v1178 = vpack.c.b16 %v1153, %v1152
        %v1179 = vpack.c.b16 %v1155, %v1154
        %v1180 = vpack.c.b16 %v1157, %v1156
        %v1181 = vpack.c.b16 %v1159, %v1158
        %v1182 = vpack.c.b16 %v1161, %v1160
        %v1183 = vpack.c.b16 %v1163, %v1162
        %v1184 = vpack.c.b16 %v1165, %v1164
        %v1185 = vpack.c.b16 %v1167, %v1166
        %v1186 = vpack.c.b16 %v1169, %v1168
        %v1187 = vpack.c.b16 %v1171, %v1170
        %1204 = vmatprep.subr.bf16.mxu0 0
        %1205 = vmatpush1.bf16.msra.mxu0 %v1172
        %1206 = vmatprep.subr.bf16.mxu0 0
        %1207 = vmatpush1.bf16.msra.mxu0 %v1173
        %1208 = vmatprep.subr.bf16.mxu0 0
        %1209 = vmatpush1.bf16.msra.mxu0 %v1174
        %1210 = vmatprep.subr.bf16.mxu0 0
        %1211 = vmatpush1.bf16.msra.mxu0 %v1175
        %1212 = vmatprep.subr.bf16.mxu0 0
        %1213 = vmatpush1.bf16.msra.mxu0 %v1176
        %1214 = vmatprep.subr.bf16.mxu0 0
        %1215 = vmatpush1.bf16.msra.mxu0 %v1177
        %1216 = vmatprep.subr.bf16.mxu0 0
        %1217 = vmatpush1.bf16.msra.mxu0 %v1178
        %1218 = vmatprep.subr.bf16.mxu0 0
        %1219 = vmatpush1.bf16.msra.mxu0 %v1179
        %1220 = vmatprep.subr.bf16.mxu0 0
        %1221 = vmatpush1.bf16.msra.mxu0 %v1180
        %1222 = vmatprep.subr.bf16.mxu0 0
        %1223 = vmatpush1.bf16.msra.mxu0 %v1181
        %1224 = vmatprep.subr.bf16.mxu0 0
        %1225 = vmatpush1.bf16.msra.mxu0 %v1182
        %1226 = vmatprep.subr.bf16.mxu0 0
        %1227 = vmatpush1.bf16.msra.mxu0 %v1183
        %1228 = vmatprep.subr.bf16.mxu0 0
        %1229 = vmatpush1.bf16.msra.mxu0 %v1184
        %1230 = vmatprep.subr.bf16.mxu0 0
        %1231 = vmatpush1.bf16.msra.mxu0 %v1185
        %1232 = vmatprep.subr.bf16.mxu0 0
        %1233 = vmatpush1.bf16.msra.mxu0 %v1186
        %1234 = vmatprep.subr.bf16.mxu0 0
        %1235 = vmatpush1.bf16.msra.mxu0 %v1187
        %1236 = vmatprep.mubr.bf16.mxu0 %v1068
        %1237 = vmatmul.mubr.bf16.gmra.mrb[0].mxu0 %v1067
        %v1238 = vpop.f32.mrb[0].mxu0
        %v1239 = vadd.f32 %v1106, %v1238
        %v1240 = vpop.f32.mrb[0].mxu0
        %v1241 = vpop.f32.mrb[0].mxu0
        %v1242 = vadd.f32 %v1106, %v1241
        %v1243 = vpop.f32.mrb[0].mxu0
        %1244 = vdwg.mxu0
        %v1245 = vmax.f32 %v1239, 0.0
        %v1246 = vmax.f32 %v1242, 0.0
        %v1247 = vld [vmem:[%s459] sm:$0xf]
        %v1248 = vpack.c.bf16 %v1246, %v1245
        %v1249 = vld [vmem:[%s463] sm:$0xff]
        %1251 = vset.pattern.permute.xlu0 0
        %1252 = vperm.xlu0 %1251, %v1249
        %v1253 = vpop.permute.xlu0 %1252
        %1255 = vmatprep.subr.bf16.mxu0 0
        %1256 = vmatpush1.bf16.xpose.msra.mxu0 %v1248
        %1257 = vmatprep.subr.bf16.mxu0 0
        %1258 = vmatpush1.bf16.xpose.msra.mxu0 0
        %1259 = vmatprep.subr.bf16.mxu0 0
        %1260 = vmatpush1.bf16.xpose.msra.mxu0 0
        %1261 = vmatprep.subr.bf16.mxu0 0
        %1262 = vmatpush1.bf16.xpose.msra.mxu0 0
        %1263 = vmatprep.subr.bf16.mxu0 0
        %1264 = vmatpush1.bf16.xpose.msra.mxu0 0
        %1265 = vmatprep.subr.bf16.mxu0 0
        %1266 = vmatpush1.bf16.xpose.msra.mxu0 0
        %1267 = vmatprep.subr.bf16.mxu0 0
        %1268 = vmatpush1.bf16.xpose.msra.mxu0 0
        %1269 = vmatprep.subr.bf16.mxu0 0
        %1270 = vmatpush1.bf16.xpose.msra.mxu0 0
        %1271 = vmatprep.subr.bf16.mxu0 0
        %1272 = vmatpush1.bf16.xpose.msra.mxu0 0
        %1273 = vmatprep.subr.bf16.mxu0 0
        %1274 = vmatpush1.bf16.xpose.msra.mxu0 0
        %1275 = vmatprep.subr.bf16.mxu0 0
        %1276 = vmatpush1.bf16.xpose.msra.mxu0 0
        %1277 = vmatprep.subr.bf16.mxu0 0
        %1278 = vmatpush1.bf16.xpose.msra.mxu0 0
        %1279 = vmatprep.subr.bf16.mxu0 0
        %1280 = vmatpush1.bf16.xpose.msra.mxu0 0
        %1281 = vmatprep.subr.bf16.mxu0 0
        %1282 = vmatpush1.bf16.xpose.msra.mxu0 0
        %1283 = vmatprep.subr.bf16.mxu0 0
        %1284 = vmatpush1.bf16.xpose.msra.mxu0 0
        %1285 = vmatprep.subr.bf16.mxu0 0
        %1286 = vmatpush1.bf16.xpose.msra.mxu0 0
        %1287 = vmatprep.mubr.bf16.mxu0 0
        %1288 = vmatmul.mubr.bf16.gmra.mrb[0].mxu0 %v1247
        %v1289 = vpop.f32.mrb[0].mxu0
        %v1290 = vadd.f32 %v1253, %v1289
        %v1291 = vpop.f32.mrb[0].mxu0
        %v1292 = vpop.f32.mrb[0].mxu0
        %v1293 = vpop.f32.mrb[0].mxu0
        %1294 = vdwg.mxu0
        %v1295 = vtanh.pop %v1290
        %vm1296 = vcmask 130048
        %1297 = vst.msk [vmem:[%s448] sm:$0xff] %vm1296, %v1295
        %s1298 = sand.u32 %s239, 1
        %s1299 = scalar_lea.sflag [#allocation4], %s1298
        %s1300 = sand.u32 %s239, 1
        %s1301 = smul.addr %s1300, 8
        %s1302 = scalar_lea.vmem [#allocation8], %s1301
        // Predicated region
        $region65: #{tpu_custom_call.1} parent=51 // pred_check
          %p1303 = pneg %p249
        $region66: #{tpu_custom_call.1} parent=51 // pred_check_branch
          %1305 = sbr.rel (%p1303) target = $region68
        $region67: #{tpu_custom_call.1} parent=51 // pred_region
          %s1307 = ssub.s32 128, 128
          %1308 = vsyncadd %s1299, %s1307
          %s1309 = smul.addr %s28, 128
          %s1310 = scalar_lea.hbm %s8, %s1309
          %s1312 = sshll.u32 %s1302, 4
          %s1313 = int_to_ptr.vmem [resolvable:$true] %s1312
          %1315 = dma.vmem_to_hbm [thread:$0]  %s1313, 128, %s1310, %s1299
        $region68: #{tpu_custom_call.1} parent=51 // pred_fallthru
          _
      $region52: #{tpu_custom_call.1} parent=5 // pred_fallthru
        _
      %p1316 = scmp.le.s32.totalorder 2, %s23
      // Predicated region
      $region69: #{tpu_custom_call.1} parent=5 // pred_check
        %p1317 = pneg %p1316
      $region70: #{tpu_custom_call.1} parent=5 // pred_check_branch
        %1319 = sbr.rel (%p1317) target = $region72
      $region71: #{tpu_custom_call.1} parent=5 // pred_region
        %s1320 = ssub.s32 %s23, 2
        // Predicated region
        $region73: #{tpu_custom_call.1} parent=71 // pred_check
          %p1321 = pneg %p255
        $region74: #{tpu_custom_call.1} parent=71 // pred_check_branch
          %1323 = sbr.rel (%p1321) target = $region76
        $region75: #{tpu_custom_call.1} parent=71 // pred_region
          %s1324 = sand.u32 %s240, 1
          %s1325 = scalar_lea.sflag [#allocation4], %s1324
          %s1326 = sand.u32 %s240, 1
          %s1327 = smul.addr %s1326, 8
          %s1328 = scalar_lea.vmem [#allocation8], %s1327
          %1329 = dma.done %s1325, 128
        $region76: #{tpu_custom_call.1} parent=71 // pred_fallthru
          _
      $region72: #{tpu_custom_call.1} parent=5 // pred_fallthru
        _
    $region6: #{tpu_custom_call.1} parent=1 // loop_footer
      %s27 = sadd.s32 1, %s23
    $region7: #{tpu_custom_call.1} parent=1 // loop_footer_branch
      %22 = sbr.rel target = $region3
    $region8: #{tpu_custom_call.1} parent=1 // loop_exit
      _
    %1330 = vsyncpa [#allocation3], 1
    %s1331 = scalar_lea.sflag [#allocation3], 1
    %1332 = vsyncpa %s1331, 1
    %1333 = vsyncpa [#allocation6], 1
    %s1334 = scalar_lea.sflag [#allocation6], 1
    %1335 = vsyncpa %s1334, 1
    %1336 = vsyncpa [#allocation4], 1
    %s1337 = scalar_lea.sflag [#allocation4], 1
    %1338 = vsyncpa %s1337, 1

</llo_original>
